<compile_context>
chip_gen: v7x
topology: tpu7x:2x2x1
jax: 0.10.0
libtpu: 0.0.40
codegen_flags: <defaults>
</compile_context>

<pallas_src>
import functools

import numpy as np
import jax
import jax.numpy as jnp
from jax.experimental import pallas as pl
from jax.experimental.pallas import tpu as pltpu


# Tap offsets (dh, dw) of the 5 non-zero entries of the diag-cross 3x3 kernel, in
# the order their weights / im2col rows are packed along the 5*Cin contraction axis.
_TAPS = ((-1, -1), (-1, 1), (0, 0), (1, -1), (1, 1))


def _make_kernel(cin, h, w):
    hw = h * w
    # shifted[idx] = x_flat[idx + dh*W + dw]  ==  roll(x_flat, shift=-(dh*W + dw))
    shifts = tuple((-(dh * w + dw)) % hw for dh, dw in _TAPS)

    def kernel(x_ref, w_ref, m_ref, o_ref, cols_ref):
        # x_ref:    (1, Cin, H*W)   one image; channels on sublanes, pixels on lanes
        # w_ref:    (Cout, 5*Cin)   fused diag-cross weights
        # m_ref:    (5, H*W)        0/1 zero-padding masks, one row per tap
        # o_ref:    (1, Cout, H*W)  flattened-NCHW output tile (lane-dense store)
        # cols_ref: (5*Cin, H*W)    im2col scratch in VMEM
        x = x_ref[0]                                        # (Cin, H*W), native dtype
        for t, ((dh, dw), shift) in enumerate(zip(_TAPS, shifts)):
            xt = x if shift == 0 else pltpu.roll(x, shift, axis=1)   # XLU lane rotate
            if (dh, dw) != (0, 0):
                xt = xt * m_ref[t:t + 1, :]                 # zero the wrapped halo
            cols_ref[t * cin:(t + 1) * cin, :] = xt
        y = jax.lax.dot_general(                            # single MXU pass, K = 5*Cin
            w_ref[...], cols_ref[...],
            dimension_numbers=(((1,), (0,)), ((), ())),
            preferred_element_type=jnp.float32)
        o_ref[0] = y.astype(o_ref.dtype)

    return kernel


def _boundary_masks(h, w, dtype):
    """(5, H*W) 0/1 masks implementing the zero padding for each tap."""
    idx = np.arange(h * w)
    hh, ww = idx // w, idx % w
    rows = []
    for dh, dw in _TAPS:
        rows.append((hh + dh >= 0) & (hh + dh < h) & (ww + dw >= 0) & (ww + dw < w))
    return np.stack(rows).astype(dtype)


def _fused_weight(weight, theta):
    """(Cout, Cin, 1, 5) -> (Cout, 5*Cin) packed in _TAPS order (exact fusion)."""
    w5 = weight[:, :, 0, :]                                  # (Cout, Cin, 5)
    center = w5[..., 2] - theta * jnp.sum(w5, axis=-1)       # (Cout, Cin)
    return jnp.concatenate(
        [w5[..., 0], w5[..., 1], center, w5[..., 3], w5[..., 4]], axis=1)


@functools.partial(jax.jit, static_argnames=("theta",))
def conv2d_diag_cross(x, weight, theta=0.7):
    """x: (N, Cin, H, W), weight: (Cout, Cin, 1, 5) -> (N, Cout, H, W)."""
    n, cin, h, wdim = x.shape
    cout = weight.shape[0]
    hw = h * wdim

    x_flat = x.reshape(n, cin, hw)                 # free reshape: flattened NCHW
    w_flat = _fused_weight(weight, theta)          # (Cout, 5*Cin)
    masks = jnp.asarray(_boundary_masks(h, wdim, np.float32), dtype=x.dtype)

    out_flat = pl.pallas_call(
        _make_kernel(cin, h, wdim),
        out_shape=jax.ShapeDtypeStruct((n, cout, hw), x.dtype),
        grid_spec=pltpu.PrefetchScalarGridSpec(
            num_scalar_prefetch=0,
            grid=(n,),
            in_specs=[
                pl.BlockSpec((1, cin, hw), lambda b: (b, 0, 0)),
                pl.BlockSpec((cout, 5 * cin), lambda b: (0, 0)),
                pl.BlockSpec((5, hw), lambda b: (0, 0)),
            ],
            out_specs=pl.BlockSpec((1, cout, hw), lambda b: (b, 0, 0)),
            scratch_shapes=[pltpu.VMEM((5 * cin, hw), x.dtype)],
        ),
        compiler_params=pltpu.CompilerParams(
            dimension_semantics=("parallel",)),
    )(x_flat, w_flat, masks)
    # TODO(synk): tile H*W (halo-aware rolls or manual DMA) once Cin*H*W outgrows a
    # single VMEM block (v7x 64 MiB budget); irrelevant at ViT-adapter sizes.
    return out_flat.reshape(n, cout, h, wdim)


# ----------------------------- references ----------------------------------------


def _reference_module(x, weight, theta):
    """Literal JAX transcription of Conv2d_Diag_Cross.forward (HIGHEST precision)."""
    cout, cin = weight.shape[:2]
    w5 = weight[:, :, 0, :]
    z = jnp.zeros((cout, cin, 1), weight.dtype)
    conv_w = jnp.concatenate(
        [w5[..., 0:1], z, w5[..., 1:2], z, w5[..., 2:3], z, w5[..., 3:4], z,
         w5[..., 4:5]], axis=2).reshape(cout, cin, 3, 3)
    dn = jax.lax.conv_dimension_numbers(x.shape, conv_w.shape,
                                        ("NCHW", "OIHW", "NCHW"))
    out_normal = jax.lax.conv_general_dilated(
        x, conv_w, (1, 1), ((1, 1), (1, 1)), dimension_numbers=dn,
        precision=jax.lax.Precision.HIGHEST)
    kdiff = jnp.sum(w5, axis=-1)[:, :, None, None]
    out_diff = jax.lax.conv_general_dilated(
        x, kdiff, (1, 1), ((0, 0), (0, 0)), dimension_numbers=dn,
        precision=jax.lax.Precision.HIGHEST)
    return out_normal - theta * out_diff


def _reference_fused(x, weight, theta):
    """Single-conv formulation using the same fused weights the kernel uses."""
    cout, cin = weight.shape[:2]
    w5 = weight[:, :, 0, :]
    center = w5[..., 2] - theta * jnp.sum(w5, axis=-1)
    z = jnp.zeros((cout, cin), weight.dtype)
    conv_w = jnp.stack(
        [w5[..., 0], z, w5[..., 1], z, center, z, w5[..., 3], z, w5[..., 4]],
        axis=-1).reshape(cout, cin, 3, 3)
    dn = jax.lax.conv_dimension_numbers(x.shape, conv_w.shape,
                                        ("NCHW", "OIHW", "NCHW"))
    return jax.lax.conv_general_dilated(
        x, conv_w, (1, 1), ((1, 1), (1, 1)), dimension_numbers=dn,
        precision=jax.lax.Precision.HIGHEST)


if __name__ == "__main__":
    key = jax.random.PRNGKey(0)
    k_x, k_w = jax.random.split(key, 2)

    N, Cin, H, W = 2, 4, 16, 16
    Cout, theta = 4, 0.7

    x = jax.random.normal(k_x, (N, Cin, H, W), jnp.float32)
    weight = 0.1 * jax.random.normal(k_w, (Cout, Cin, 1, 5), jnp.float32)

    y = conv2d_diag_cross(x, weight, theta=theta)
    jax.block_until_ready(y)
    assert y.shape == (N, Cout, H, W)

    # (1) The wrapper's weight fusion is algebraically exact: check it against a
    #     literal transcription of the PyTorch forward, both at HIGHEST precision.
    y_lit = _reference_module(x, weight, theta)
    y_fused = _reference_fused(x, weight, theta)
    assert jnp.allclose(y_lit, y_fused, atol=1e-5, rtol=1e-5), "fusion algebra mismatch"

    # (2) End-to-end kernel check. Tolerance leaves headroom for the TPU default
    #     (bf16-pass) f32 MXU matmul vs the HIGHEST-precision XLA reference; any
    #     structural bug (wrong tap / shift / mask / theta) produces O(1e-1) errors.
    assert jnp.allclose(y, y_lit, atol=1e-2, rtol=1e-2), "kernel mismatch vs reference"

    print("KERNEL_OK")
</pallas_src>

<mosaic_0001>
module attributes {stable_mosaic.version = 11 : i64} {
  func.func @kernel(%arg0: i32, %arg1: memref<1x4x256xf32, #tpu.memory_space<vmem>>, %arg2: memref<4x20xf32, #tpu.memory_space<vmem>>, %arg3: memref<5x256xf32, #tpu.memory_space<vmem>>, %arg4: memref<1x4x256xf32, #tpu.memory_space<vmem>>, %arg5: memref<20x256xf32, #tpu.memory_space<vmem>>) attributes {dimension_semantics = [#tpu.dimension_semantics<parallel>], iteration_bounds = array<i64: 2>, scalar_prefetch = 0 : i64, scratch_operands = 1 : i64, tpu.core_type = #tpu.core_type<tc>, window_params = [{transform_indices = @transform_0, window_bounds = array<i64: 1, 4, 256>}, {pipeline_mode = #tpu.pipeline_mode<synchronous>, transform_indices = @transform_1, window_bounds = array<i64: 4, 20>}, {pipeline_mode = #tpu.pipeline_mode<synchronous>, transform_indices = @transform_2, window_bounds = array<i64: 5, 256>}, {transform_indices = @transform_3, window_bounds = array<i64: 1, 4, 256>}]} {
    %c0 = arith.constant 0 : index
    %c0_0 = arith.constant 0 : index
    %c0_1 = arith.constant 0 : index
    %0 = vector.load %arg1[%c0, %c0_0, %c0_1] : memref<1x4x256xf32, #tpu.memory_space<vmem>>, vector<1x4x256xf32>
    %1 = vector.shape_cast %0 : vector<1x4x256xf32> to vector<4x256xf32>
    %c17_i32 = arith.constant 17 : i32
    %2 = tpu.dynamic_rotate %1 by %c17_i32 dim 1 : vector<4x256xf32>, i32 -> vector<4x256xf32>
    %c0_2 = arith.constant 0 : index
    %c0_3 = arith.constant 0 : index
    %3 = vector.load %arg3[%c0_2, %c0_3] : memref<5x256xf32, #tpu.memory_space<vmem>>, vector<1x256xf32>
    %4 = vector.broadcast %3 : vector<1x256xf32> to vector<4x256xf32>
    %5 = arith.mulf %2, %4 : vector<4x256xf32>
    %c0_4 = arith.constant 0 : index
    %c0_5 = arith.constant 0 : index
    %6 = vector.load %arg5[%c0_4, %c0_5] : memref<20x256xf32, #tpu.memory_space<vmem>>, vector<4x256xf32>
    tpu.vector_store %arg5[%c0_4, %c0_5], %5 {strides = array<i32>} : memref<20x256xf32, #tpu.memory_space<vmem>>, vector<4x256xf32>,
    %c15_i32 = arith.constant 15 : i32
    %7 = tpu.dynamic_rotate %1 by %c15_i32 dim 1 : vector<4x256xf32>, i32 -> vector<4x256xf32>
    %c1 = arith.constant 1 : index
    %c0_6 = arith.constant 0 : index
    %8 = vector.load %arg3[%c1, %c0_6] : memref<5x256xf32, #tpu.memory_space<vmem>>, vector<1x256xf32>
    %9 = vector.broadcast %8 : vector<1x256xf32> to vector<4x256xf32>
    %10 = arith.mulf %7, %9 : vector<4x256xf32>
    %c4 = arith.constant 4 : index
    %c0_7 = arith.constant 0 : index
    %11 = vector.load %arg5[%c4, %c0_7] : memref<20x256xf32, #tpu.memory_space<vmem>>, vector<4x256xf32>
    tpu.vector_store %arg5[%c4, %c0_7], %10 {strides = array<i32>} : memref<20x256xf32, #tpu.memory_space<vmem>>, vector<4x256xf32>,
    %c8 = arith.constant 8 : index
    %c0_8 = arith.constant 0 : index
    %12 = vector.load %arg5[%c8, %c0_8] : memref<20x256xf32, #tpu.memory_space<vmem>>, vector<4x256xf32>
    tpu.vector_store %arg5[%c8, %c0_8], %1 {strides = array<i32>} : memref<20x256xf32, #tpu.memory_space<vmem>>, vector<4x256xf32>,
    %c241_i32 = arith.constant 241 : i32
    %13 = tpu.dynamic_rotate %1 by %c241_i32 dim 1 : vector<4x256xf32>, i32 -> vector<4x256xf32>
    %c3 = arith.constant 3 : index
    %c0_9 = arith.constant 0 : index
    %14 = vector.load %arg3[%c3, %c0_9] : memref<5x256xf32, #tpu.memory_space<vmem>>, vector<1x256xf32>
    %15 = vector.broadcast %14 : vector<1x256xf32> to vector<4x256xf32>
    %16 = arith.mulf %13, %15 : vector<4x256xf32>
    %c12 = arith.constant 12 : index
    %c0_10 = arith.constant 0 : index
    %17 = vector.load %arg5[%c12, %c0_10] : memref<20x256xf32, #tpu.memory_space<vmem>>, vector<4x256xf32>
    tpu.vector_store %arg5[%c12, %c0_10], %16 {strides = array<i32>} : memref<20x256xf32, #tpu.memory_space<vmem>>, vector<4x256xf32>,
    %c239_i32 = arith.constant 239 : i32
    %18 = tpu.dynamic_rotate %1 by %c239_i32 dim 1 : vector<4x256xf32>, i32 -> vector<4x256xf32>
    %c4_11 = arith.constant 4 : index
    %c0_12 = arith.constant 0 : index
    %19 = vector.load %arg3[%c4_11, %c0_12] : memref<5x256xf32, #tpu.memory_space<vmem>>, vector<1x256xf32>
    %20 = vector.broadcast %19 : vector<1x256xf32> to vector<4x256xf32>
    %21 = arith.mulf %18, %20 : vector<4x256xf32>
    %c16 = arith.constant 16 : index
    %c0_13 = arith.constant 0 : index
    %22 = vector.load %arg5[%c16, %c0_13] : memref<20x256xf32, #tpu.memory_space<vmem>>, vector<4x256xf32>
    tpu.vector_store %arg5[%c16, %c0_13], %21 {strides = array<i32>} : memref<20x256xf32, #tpu.memory_space<vmem>>, vector<4x256xf32>,
    %c0_14 = arith.constant 0 : index
    %c0_15 = arith.constant 0 : index
    %23 = vector.load %arg2[%c0_14, %c0_15] : memref<4x20xf32, #tpu.memory_space<vmem>>, vector<4x20xf32>
    %c0_16 = arith.constant 0 : index
    %c0_17 = arith.constant 0 : index
    %24 = vector.load %arg5[%c0_16, %c0_17] : memref<20x256xf32, #tpu.memory_space<vmem>>, vector<20x256xf32>
    %cst = arith.constant dense<0.000000e+00> : vector<4x256xf32>
    %25 = tpu.matmul %23, %24, %cst {dimension_numbers = #tpu.dot_dimension_numbers<[1], [0], [0], [1], [0, 0, 1, 1], [], []>} : vector<4x20xf32>, vector<20x256xf32>, vector<4x256xf32> -> vector<4x256xf32>
    %c0_18 = arith.constant 0 : index
    %c0_19 = arith.constant 0 : index
    %c0_20 = arith.constant 0 : index
    %26 = vector.load %arg4[%c0_18, %c0_19, %c0_20] : memref<1x4x256xf32, #tpu.memory_space<vmem>>, vector<1x4x256xf32>
    %27 = vector.shape_cast %26 : vector<1x4x256xf32> to vector<4x256xf32>
    %28 = vector.shape_cast %25 : vector<4x256xf32> to vector<1x4x256xf32>
    tpu.vector_store %arg4[%c0_18, %c0_19, %c0_20], %28 {strides = array<i32>} : memref<1x4x256xf32, #tpu.memory_space<vmem>>, vector<1x4x256xf32>,
    return
  }
  func.func @transform_0(%arg0: i32) -> (i32, i32, i32) {
    %c0_i32 = arith.constant 0 : i32
    %c0_i32_0 = arith.constant 0 : i32
    %c0_i32_1 = arith.constant 0 : i32
    return %arg0, %c0_i32, %c0_i32_0 : i32, i32, i32
  }
  func.func @transform_1(%arg0: i32) -> (i32, i32) {
    %c0_i32 = arith.constant 0 : i32
    %c0_i32_0 = arith.constant 0 : i32
    %c0_i32_1 = arith.constant 0 : i32
    return %c0_i32, %c0_i32_0 : i32, i32
  }
  func.func @transform_2(%arg0: i32) -> (i32, i32) {
    %c0_i32 = arith.constant 0 : i32
    %c0_i32_0 = arith.constant 0 : i32
    %c0_i32_1 = arith.constant 0 : i32
    return %c0_i32, %c0_i32_0 : i32, i32
  }
  func.func @transform_3(%arg0: i32) -> (i32, i32, i32) {
    %c0_i32 = arith.constant 0 : i32
    %c0_i32_0 = arith.constant 0 : i32
    %c0_i32_1 = arith.constant 0 : i32
    return %arg0, %c0_i32, %c0_i32_0 : i32, i32, i32
  }
}

</mosaic_0001>

<llo_original>
// kernel: conv2d_diag_cross.1
$region0: #{conv2d_diag_cross.1}
  #allocation0 [shape = 'u32[]', space=smem, size = 0x4, offset = 0x4, fixed_abs, tag = 'smem constant byte address 0x4 - core index']
  #allocation1 [shape = 'u32[144,128]{1,0:T(1,128)}', space=vmem, size = 0x12000, scoped, tag = 'internal scratch']
  #allocation2 [shape = 'f32[20,256]{1,0:T(8,128)}', space=vmem, size = 0x6000, scoped, tag = 'scratch operand']
  %s0 = inlined_call_operand.vmem [shape: f32[2,4,256], index: 0, kind: input, shape index: {}]
  %s1 = inlined_call_operand.vmem [shape: f32[4,20], index: 1, kind: input, shape index: {}]
  %s2 = inlined_call_operand.vmem [shape: f32[5,256], index: 2, kind: input, shape index: {}]
  %s3 = inlined_call_operand.vmem [shape: f32[2,4,256], index: 3, kind: output, shape index: {}]
  %s4 = sld [smem:[#allocation0]]
  $region45: #{conv2d_diag_cross.1} parent=0
    _
  %s6 = ssub.s32 1, %s4
  %s7 = scalar_select 0, %s6, %s4
  loop: start=0, step=1, limit=4
  $region2: #{conv2d_diag_cross.1} parent=0 // loop_pre_header
    _
  $region3: #{conv2d_diag_cross.1} parent=0 // loop_header
    %s9 = sphi 0, %s13
    %p10 = scmp.ge.s32.totalorder %s9, 4
    %s19 = sphi 0, %s21
    %s22 = sphi 0, %s19
    %s23 = sphi 0, %s22
    %s39 = sphi 0, %s23
    %s43 = sphi 0, %s43
    %s45 = sphi 0, %s43
    %s46 = sphi 0, %s45
    %s60 = sphi 0, %s46
    %s64 = sphi 0, %s64
    %s66 = sphi 0, %s64
    %s67 = sphi 0, %s66
    %s81 = sphi 0, %s67
    %s87 = sphi 0, %s89
    %s90 = sphi 0, %s87
    %s91 = sphi 0, %s90
    %s107 = sphi 0, %s91
  $region4: #{conv2d_diag_cross.1} parent=0 // loop_header_branch
    %12 = sbr.rel (%p10) target = $region8
  $region5: #{conv2d_diag_cross.1} parent=0 // loop_body
    %s14 = ssub.s32 %s9, 1
    %s15 = ssub.s32 %s9, 2
    %s16 = sadd.s32 %s9, 1
    %s17 = ssub.s32 %s9, %s16
    %p18 = scmp.eq.s32.totalorder %s17, 0
    %s20 = sadd.s32 %s19, 1
    %s21 = scalar_select %p18, %s19, %s20
    %p24 = pneg %p18
    %p25 = scmp.eq.s32.totalorder %s9, 1
    %p26 = por %p24, %p25
    %p27 = scmp.ne.s32.totalorder %s19, %s22
    %p28 = scmp.eq.s32.totalorder %s9, 0
    %p29 = por %p27, %p28
    %p30 = scmp.ne.s32.totalorder %s19, %s22
    %p31 = scmp.eq.s32.totalorder %s14, 1
    %p32 = por %p30, %p31
    %p33 = scmp.ne.s32.totalorder %s22, %s23
    %p34 = scmp.eq.s32.totalorder %s14, 0
    %p35 = por %p33, %p34
    %p36 = scmp.ne.s32.totalorder %s22, %s23
    %p37 = scmp.eq.s32.totalorder %s15, 1
    %p38 = por %p36, %p37
    %p40 = scmp.ne.s32.totalorder %s23, %s39
    %p41 = scmp.eq.s32.totalorder %s15, 0
    %p42 = por %p40, %p41
    %s44 = sadd.s32 %s43, 1
    %p47 = scmp.eq.s32.totalorder %s9, 1
    %p48 = scmp.ne.s32.totalorder %s43, %s45
    %p49 = scmp.eq.s32.totalorder %s9, 0
    %p50 = por %p48, %p49
    %p51 = scmp.ne.s32.totalorder %s43, %s45
    %p52 = scmp.eq.s32.totalorder %s14, 1
    %p53 = por %p51, %p52
    %p54 = scmp.ne.s32.totalorder %s45, %s46
    %p55 = scmp.eq.s32.totalorder %s14, 0
    %p56 = por %p54, %p55
    %p57 = scmp.ne.s32.totalorder %s45, %s46
    %p58 = scmp.eq.s32.totalorder %s15, 1
    %p59 = por %p57, %p58
    %p61 = scmp.ne.s32.totalorder %s46, %s60
    %p62 = scmp.eq.s32.totalorder %s15, 0
    %p63 = por %p61, %p62
    %s65 = sadd.s32 %s64, 1
    %p68 = scmp.eq.s32.totalorder %s9, 1
    %p69 = scmp.ne.s32.totalorder %s64, %s66
    %p70 = scmp.eq.s32.totalorder %s9, 0
    %p71 = por %p69, %p70
    %p72 = scmp.ne.s32.totalorder %s64, %s66
    %p73 = scmp.eq.s32.totalorder %s14, 1
    %p74 = por %p72, %p73
    %p75 = scmp.ne.s32.totalorder %s66, %s67
    %p76 = scmp.eq.s32.totalorder %s14, 0
    %p77 = por %p75, %p76
    %p78 = scmp.ne.s32.totalorder %s66, %s67
    %p79 = scmp.eq.s32.totalorder %s15, 1
    %p80 = por %p78, %p79
    %p82 = scmp.ne.s32.totalorder %s67, %s81
    %p83 = scmp.eq.s32.totalorder %s15, 0
    %p84 = por %p82, %p83
    %s85 = ssub.s32 %s9, %s16
    %p86 = scmp.eq.s32.totalorder %s85, 0
    %s88 = sadd.s32 %s87, 1
    %s89 = scalar_select %p86, %s87, %s88
    %p92 = pneg %p86
    %p93 = scmp.eq.s32.totalorder %s9, 1
    %p94 = por %p92, %p93
    %p95 = scmp.ne.s32.totalorder %s87, %s90
    %p96 = scmp.eq.s32.totalorder %s9, 0
    %p97 = por %p95, %p96
    %p98 = scmp.ne.s32.totalorder %s87, %s90
    %p99 = scmp.eq.s32.totalorder %s14, 1
    %p100 = por %p98, %p99
    %p101 = scmp.ne.s32.totalorder %s90, %s91
    %p102 = scmp.eq.s32.totalorder %s14, 0
    %p103 = por %p101, %p102
    %p104 = scmp.ne.s32.totalorder %s90, %s91
    %p105 = scmp.eq.s32.totalorder %s15, 1
    %p106 = por %p104, %p105
    %p108 = scmp.ne.s32.totalorder %s91, %s107
    %p109 = scmp.eq.s32.totalorder %s15, 0
    %p110 = por %p108, %p109
    %p111 = scmp.le.s32.totalorder 1, %s9
    %p112 = scmp.lt.s32.totalorder %s9, 3
    %p113 = pnand %p111, %p112
    %p114 = pneg %p113
    // Predicated region
    $region9: #{conv2d_diag_cross.1} parent=5 // pred_check
      _
    $region10: #{conv2d_diag_cross.1} parent=5 // pred_check_branch
      %116 = sbr.rel (%p113) target = $region12
    $region11: #{conv2d_diag_cross.1} parent=5 // pred_region
      %s117 = ssub.s32 %s9, 1
      // Predicated region
      $region13: #{conv2d_diag_cross.1} parent=11 // pred_check
        %p118 = pneg %p56
      $region14: #{conv2d_diag_cross.1} parent=11 // pred_check_branch
        %120 = sbr.rel (%p118) target = $region16
      $region15: #{conv2d_diag_cross.1} parent=11 // pred_region
        _
      $region16: #{conv2d_diag_cross.1} parent=11 // pred_fallthru
        _
      // Predicated region
      $region17: #{conv2d_diag_cross.1} parent=11 // pred_check
        %p121 = pneg %p77
      $region18: #{conv2d_diag_cross.1} parent=11 // pred_check_branch
        %123 = sbr.rel (%p121) target = $region20
      $region19: #{conv2d_diag_cross.1} parent=11 // pred_region
        _
      $region20: #{conv2d_diag_cross.1} parent=11 // pred_fallthru
        _
    $region12: #{conv2d_diag_cross.1} parent=5 // pred_fallthru
      _
    %p124 = scmp.lt.s32.totalorder %s9, 2
    // Predicated region
    $region21: #{conv2d_diag_cross.1} parent=5 // pred_check
      %p125 = pneg %p124
    $region22: #{conv2d_diag_cross.1} parent=5 // pred_check_branch
      %127 = sbr.rel (%p125) target = $region24
    $region23: #{conv2d_diag_cross.1} parent=5 // pred_region
      // Predicated region
      $region25: #{conv2d_diag_cross.1} parent=23 // pred_check
        %p128 = pneg %p29
      $region26: #{conv2d_diag_cross.1} parent=23 // pred_check_branch
        %130 = sbr.rel (%p128) target = $region28
      $region27: #{conv2d_diag_cross.1} parent=23 // pred_region
        %p131 = scmp.lt.s32.totalorder %s9, 1
        %s132 = scalar_select %p131, %s9, 1
        %s133 = smul.addr %s132, 2
        %s134 = smul.addr %s133, 4
        %s135 = scalar_lea.vmem %s0, %s134
      $region28: #{conv2d_diag_cross.1} parent=23 // pred_fallthru
        _
    $region24: #{conv2d_diag_cross.1} parent=5 // pred_fallthru
      _
    %p136 = scmp.le.s32.totalorder 1, %s9
    %p137 = scmp.lt.s32.totalorder %s9, 3
    %p138 = pnand %p136, %p137
    %p139 = pneg %p138
    // Predicated region
    $region29: #{conv2d_diag_cross.1} parent=5 // pred_check
      _
    $region30: #{conv2d_diag_cross.1} parent=5 // pred_check_branch
      %141 = sbr.rel (%p138) target = $region32
    $region31: #{conv2d_diag_cross.1} parent=5 // pred_region
      %s142 = ssub.s32 %s9, 1
      %p143 = scmp.lt.s32.totalorder %s14, 1
      %s144 = scalar_select %p143, %s14, 1
      %s145 = smul.addr %s144, 2
      %s146 = smul.addr %s145, 4
      %s147 = scalar_lea.vmem %s0, %s146
      %p148 = pneg %p35
      %p149 = pneg %p32
      %p150 = pneg %p56
      %p151 = pneg %p53
      %p152 = pneg %p77
      %p153 = pneg %p74
      %p154 = pneg %p103
      %p155 = pneg %p100
      %p156 = scmp.lt.s32.totalorder %s14, 1
      %s157 = scalar_select %p156, %s14, 1
      %s158 = smul.addr %s157, 2
      %s159 = smul.addr %s158, 4
      %s160 = scalar_lea.vmem %s3, %s159
      %p161 = scmp.lt.s32.totalorder %s14, 1
      %s162 = scalar_select %p161, %s14, 1
      %s163 = smul.addr %s162, 2
      %s164 = smul.addr %s163, 4
      %s165 = scalar_lea.vmem %s0, %s164
      %p166 = scmp.lt.s32.totalorder %s14, 1
      %s167 = scalar_select %p166, %s14, 1
      %s168 = smul.addr %s167, 2
      %s169 = smul.addr %s168, 4
      %s170 = scalar_lea.vmem %s3, %s169
      %v171 = vld [vmem:[%s165] sm:$0xff]
      %v173 = vcombine.high %v171, %v171
      %175 = vrot.lane.b32.xlu0 %v171, 17
      %v176 = vpop.permute.xlu0 %175
      %177 = vrot.lane.b32.xlu0 %v173, 17
      %v178 = vpop.permute.xlu0 %177
      %v179 = vlaneseq
      %v180 = vand.u32 %v179, 127
      %vm181 = vcmp.lt.s32.totalorder %v180, 17
      %v182 = vsel %vm181, %v176, %v178
      %v183 = vsel %vm181, %v178, %v176
      %v184 = vld [vmem:[%s2] ss:$8 sm:$0x3]
      %v186 = vlaneseq
      %v187 = vshrl.u32 %v186, 7
      %v188 = vsub.s32 0, %v187
      %v189 = vrot.slane %v184, %v188
      %v190 = vlaneseq
      %v191 = vshrl.u32 %v190, 7
      %v192 = vsub.s32 1, %v191
      %v193 = vrot.slane %v184, %v192
      %v196 = vmul.f32 %v183, %v189
      %v197 = vmul.f32 %v182, %v193
      %198 = vst [vmem:[#allocation2] sm:$0xf] %v196
      %199 = vst [vmem:[#allocation2 + $0x8] sm:$0xf] %v197
      %200 = vrot.lane.b32.xlu0 %v171, 15
      %v201 = vpop.permute.xlu0 %200
      %202 = vrot.lane.b32.xlu0 %v173, 15
      %v203 = vpop.permute.xlu0 %202
      %vm204 = vcmp.lt.s32.totalorder %v180, 15
      %v205 = vsel %vm204, %v201, %v203
      %v206 = vsel %vm204, %v203, %v201
      %s207 = scalar_lea.vmem %s2, 1
      %v208 = vld [vmem:[%s207] ss:$8 sm:$0x3]
      %v210 = vlaneseq
      %v211 = vshrl.u32 %v210, 7
      %v212 = vsub.s32 0, %v211
      %v213 = vrot.slane %v208, %v212
      %v214 = vlaneseq
      %v215 = vshrl.u32 %v214, 7
      %v216 = vsub.s32 1, %v215
      %v217 = vrot.slane %v208, %v216
      %v220 = vmul.f32 %v206, %v213
      %v221 = vmul.f32 %v205, %v217
      %v224 = vrot.slane %v220, 4
      %v225 = vrot.slane %v221, 4
      %228 = vst [vmem:[#allocation2] sm:$0xf0] %v224
      %229 = vst [vmem:[#allocation2 + $0x8] sm:$0xf0] %v225
      %230 = vst [vmem:[#allocation2 + $0x10] sm:$0xf] %v171
      %231 = vst [vmem:[#allocation2 + $0x18] sm:$0xf] %v173
      %232 = vrot.lane.b32.xlu0 %v171, 113
      %v233 = vpop.permute.xlu0 %232
      %234 = vrot.lane.b32.xlu0 %v173, 113
      %v235 = vpop.permute.xlu0 %234
      %vm236 = vcmp.lt.s32.totalorder %v180, 113
      %v237 = vsel %vm236, %v233, %v235
      %v238 = vsel %vm236, %v235, %v233
      %s239 = scalar_lea.vmem %s2, 3
      %v240 = vld [vmem:[%s239] ss:$8 sm:$0x3]
      %v242 = vlaneseq
      %v243 = vshrl.u32 %v242, 7
      %v244 = vsub.s32 0, %v243
      %v245 = vrot.slane %v240, %v244
      %v246 = vlaneseq
      %v247 = vshrl.u32 %v246, 7
      %v248 = vsub.s32 1, %v247
      %v249 = vrot.slane %v240, %v248
      %v252 = vmul.f32 %v237, %v245
      %v253 = vmul.f32 %v238, %v249
      %v256 = vrot.slane %v252, 4
      %v257 = vrot.slane %v253, 4
      %260 = vst [vmem:[#allocation2 + $0x10] sm:$0xf0] %v256
      %261 = vst [vmem:[#allocation2 + $0x18] sm:$0xf0] %v257
      %262 = vrot.lane.b32.xlu0 %v171, 111
      %v263 = vpop.permute.xlu0 %262
      %264 = vrot.lane.b32.xlu0 %v173, 111
      %v265 = vpop.permute.xlu0 %264
      %vm266 = vcmp.lt.s32.totalorder %v180, 111
      %v267 = vsel %vm266, %v263, %v265
      %v268 = vsel %vm266, %v265, %v263
      %s269 = scalar_lea.vmem %s2, 4
      %v270 = vld [vmem:[%s269] ss:$8 sm:$0x3]
      %v272 = vlaneseq
      %v273 = vshrl.u32 %v272, 7
      %v274 = vsub.s32 0, %v273
      %v275 = vrot.slane %v270, %v274
      %v276 = vlaneseq
      %v277 = vshrl.u32 %v276, 7
      %v278 = vsub.s32 1, %v277
      %v279 = vrot.slane %v270, %v278
      %v282 = vmul.f32 %v267, %v275
      %v283 = vmul.f32 %v268, %v279
      %284 = vst [vmem:[#allocation2 + $0x20] sm:$0xf] %v282
      %285 = vst [vmem:[#allocation2 + $0x28] sm:$0xf] %v283
      %v286 = vld [vmem:[%s1] sm:$0xf]
      %v287 = vld [vmem:[#allocation2] sm:$0xff]
      %v288 = vld [vmem:[#allocation2 + $0x8] sm:$0xff]
      %v289 = vld [vmem:[#allocation2 + $0x10] sm:$0xff]
      %v290 = vld [vmem:[#allocation2 + $0x18] sm:$0xff]
      %v291 = vld [vmem:[#allocation2 + $0x20] sm:$0xf]
      %v292 = vld [vmem:[#allocation2 + $0x28] sm:$0xf]
      %vm293 = vcmask 162816
      %v295 = vsel %vm293, %v286, 0
      %vm297 = vcmask 1043456
      %v299 = vsel %vm297, %v291, 0
      %v302 = vsel %vm297, %v292, 0
      %304 = vmatprep.subr.mxu0 %v288
      %305 = vmatpush1.msra.mxu0 %v287
      %306 = vmatprep.subr.mxu0 %v290
      %307 = vmatpush1.msra.mxu0 %v289
      %308 = vmatprep.subr.mxu0 %v302
      %309 = vmatpush1.msra.mxu0 %v299
      %310 = vmatprep.subr.mxu0 0.0
      %311 = vmatpush1.msra.mxu0 0.0
      %312 = vmatprep.subr.mxu0 0.0
      %313 = vmatpush1.msra.mxu0 0.0
      %314 = vmatprep.subr.mxu0 0.0
      %315 = vmatpush1.msra.mxu0 0.0
      %316 = vmatprep.subr.mxu0 0.0
      %317 = vmatpush1.msra.mxu0 0.0
      %318 = vmatprep.subr.mxu0 0.0
      %319 = vmatpush1.msra.mxu0 0.0
      %320 = vmatprep.subr.mxu0 0.0
      %321 = vmatpush1.msra.mxu0 0.0
      %322 = vmatprep.subr.mxu0 0.0
      %323 = vmatpush1.msra.mxu0 0.0
      %324 = vmatprep.subr.mxu0 0.0
      %325 = vmatpush1.msra.mxu0 0.0
      %326 = vmatprep.subr.mxu0 0.0
      %327 = vmatpush1.msra.mxu0 0.0
      %328 = vmatprep.subr.mxu0 0.0
      %329 = vmatpush1.msra.mxu0 0.0
      %330 = vmatprep.subr.mxu0 0.0
      %331 = vmatpush1.msra.mxu0 0.0
      %332 = vmatprep.subr.mxu0 0.0
      %333 = vmatpush1.msra.mxu0 0.0
      %334 = vmatprep.subr.mxu0 0.0
      %335 = vmatpush1.msra.mxu0 0.0
      %336 = vmatprep.subr.mxu0 0.0
      %337 = vmatpush1.msra.mxu0 0.0
      %338 = vmatprep.subr.mxu0 0.0
      %339 = vmatpush1.msra.mxu0 0.0
      %340 = vmatprep.subr.mxu0 0.0
      %341 = vmatpush1.msra.mxu0 0.0
      %342 = vmatprep.subr.mxu0 0.0
      %343 = vmatpush1.msra.mxu0 0.0
      %344 = vmatprep.subr.mxu0 0.0
      %345 = vmatpush1.msra.mxu0 0.0
      %346 = vmatprep.subr.mxu0 0.0
      %347 = vmatpush1.msra.mxu0 0.0
      %348 = vmatprep.subr.mxu0 0.0
      %349 = vmatpush1.msra.mxu0 0.0
      %350 = vmatprep.subr.mxu0 0.0
      %351 = vmatpush1.msra.mxu0 0.0
      %352 = vmatprep.subr.mxu0 0.0
      %353 = vmatpush1.msra.mxu0 0.0
      %354 = vmatprep.subr.mxu0 0.0
      %355 = vmatpush1.msra.mxu0 0.0
      %356 = vmatprep.subr.mxu0 0.0
      %357 = vmatpush1.msra.mxu0 0.0
      %358 = vmatprep.subr.mxu0 0.0
      %359 = vmatpush1.msra.mxu0 0.0
      %360 = vmatprep.subr.mxu0 0.0
      %361 = vmatpush1.msra.mxu0 0.0
      %362 = vmatprep.subr.mxu0 0.0
      %363 = vmatpush1.msra.mxu0 0.0
      %364 = vmatprep.subr.mxu0 0.0
      %365 = vmatpush1.msra.mxu0 0.0
      %366 = vmatprep.subr.mxu0 0.0
      %367 = vmatpush1.msra.mxu0 0.0
      %368 = vmatprep.mubr.f32.mxu0 0.0
      %369 = vmatmul.mubr.f32.gmra.mrb[0].mxu0 %v295
      %v370 = vpop.f32.mrb[0].mxu0
      %v371 = vadd.f32 0.0, %v370
      %v372 = vpop.f32.mrb[0].mxu0
      %v373 = vadd.f32 0.0, %v372
      %374 = vdwg.mxu0
      %v377 = vcombine.low %v371, %v373
      %379 = vst [vmem:[%s170] sm:$0xff] %v377
      %p380 = scmp.lt.s32.totalorder %s14, 1
      %s381 = scalar_select %p380, %s14, 1
      %s382 = smul.addr %s381, 2
      %s383 = smul.addr %s382, 4
      %s384 = scalar_lea.vmem %s3, %s383
      // Predicated region
      $region33: #{conv2d_diag_cross.1} parent=31 // pred_check
        %p385 = pneg %p100
      $region34: #{conv2d_diag_cross.1} parent=31 // pred_check_branch
        %387 = sbr.rel (%p385) target = $region36
      $region35: #{conv2d_diag_cross.1} parent=31 // pred_region
        _
      $region36: #{conv2d_diag_cross.1} parent=31 // pred_fallthru
        _
    $region32: #{conv2d_diag_cross.1} parent=5 // pred_fallthru
      _
    %p388 = scmp.le.s32.totalorder 2, %s9
    // Predicated region
    $region37: #{conv2d_diag_cross.1} parent=5 // pred_check
      %p389 = pneg %p388
    $region38: #{conv2d_diag_cross.1} parent=5 // pred_check_branch
      %391 = sbr.rel (%p389) target = $region40
    $region39: #{conv2d_diag_cross.1} parent=5 // pred_region
      %s392 = ssub.s32 %s9, 2
      // Predicated region
      $region41: #{conv2d_diag_cross.1} parent=39 // pred_check
        %p393 = pneg %p106
      $region42: #{conv2d_diag_cross.1} parent=39 // pred_check_branch
        %395 = sbr.rel (%p393) target = $region44
      $region43: #{conv2d_diag_cross.1} parent=39 // pred_region
        %p396 = scmp.lt.s32.totalorder %s15, 1
        %s397 = scalar_select %p396, %s15, 1
        %s398 = smul.addr %s397, 2
        %s399 = smul.addr %s398, 4
        %s400 = scalar_lea.vmem %s3, %s399
      $region44: #{conv2d_diag_cross.1} parent=39 // pred_fallthru
        _
    $region40: #{conv2d_diag_cross.1} parent=5 // pred_fallthru
      _
  $region6: #{conv2d_diag_cross.1} parent=0 // loop_footer
    %s13 = sadd.s32 1, %s9
  $region7: #{conv2d_diag_cross.1} parent=0 // loop_footer_branch
    %8 = sbr.rel target = $region3
  $region8: #{conv2d_diag_cross.1} parent=0 // loop_exit
    _

</llo_original>
